<compile_context>
chip_gen: v7x
topology: tpu7x:2x2x1
jax: 0.10.0
libtpu: 0.0.40
codegen_flags: <defaults>
</compile_context>

<pallas_src>
import jax
import jax.numpy as jnp
from jax import lax
from jax.experimental import pallas as pl
from jax.experimental.pallas import tpu as pltpu


def _self_attention_kernel(x_ref, mqk_ref, wv_ref, gamma_ref, o_ref):
    # x_ref:   (C, N)   full flattened feature map for this batch element (resident)
    # mqk_ref: (C, C)   Wq^T @ Wk (resident)
    # wv_ref:  (C, C)   Wv        (resident)
    # gamma_ref: (1, 1) scalar in SMEM
    # o_ref:   (C, tn)  output column tile
    tn = o_ref.shape[-1]

    start = pl.program_id(1) * tn
    if tn % 128 == 0:
        start = pl.multiple_of(start, 128)

    x = x_ref[...]                              # (C, N) native dtype -> MXU operand
    x_tile = x_ref[:, pl.ds(start, tn)]         # (C, tn) native dtype (also residual)

    # kx = (Wq^T Wk) @ x_tile; f32 accumulate, cast back to native MXU dtype.
    kx = jnp.dot(mqk_ref[...], x_tile,
                 preferred_element_type=jnp.float32).astype(x.dtype)   # (C, tn)

    # scores tile: s = x^T @ kx, contracting the full channel depth C
    # (no f/g intermediates, no explicit transpose of an N-long array).
    s = lax.dot_general(
        x, kx,
        dimension_numbers=(((0,), (0,)), ((), ())),
        preferred_element_type=jnp.float32,
    )                                                                   # (N, tn) f32

    # column-wise softmax (== torch softmax over dim=1); elementwise math in f32.
    m = jnp.max(s, axis=0, keepdims=True)                               # (1, tn)
    e = jnp.exp(s - m)                                                  # (N, tn) f32
    colsum = jnp.sum(e, axis=0, keepdims=True)                          # (1, tn)

    # deferred-normalization weighted feature sums: xe = x @ exp(s - m),
    # accumulated in f32, then scaled by an approx (EUP) reciprocal.
    xe = jnp.dot(x, e.astype(x.dtype),
                 preferred_element_type=jnp.float32)                    # (C, tn) f32
    xe = xe * pl.reciprocal(colsum, approx=True)                        # beta-weighted x

    # value projection after the attention average: Wv @ (x beta) == (Wv x) beta.
    o = jnp.dot(wv_ref[...], xe.astype(wv_ref.dtype),
                preferred_element_type=jnp.float32)                     # (C, tn) f32

    gamma = gamma_ref[0, 0]
    o_ref[...] = (gamma * o + x_tile.astype(jnp.float32)).astype(o_ref.dtype)


def _pick_col_tile(n):
    """Attention-column tile width, sized per TPU generation."""
    if n % 128 != 0:
        return n                                  # ragged/tiny N: one full tile
    try:
        kind = jax.devices()[0].device_kind.lower()
    except Exception:
        kind = ""
    # v5e / v6e: 128 MiB VMEM -> bigger tiles amortize per-grid-step overhead.
    # v7x (and unknown parts): 64 MiB VMEM -> keep the (N, tn) f32 slab small.
    big_vmem = ("v5 lite" in kind) or ("v5e" in kind) or ("v6" in kind)
    target = 512 if big_vmem else 256
    tn = min(target, n)
    while n % tn != 0:                            # multiple of 128 that divides N
        tn -= 128
    return tn


def _vmem_limit_bytes(c, n, tn, itemsize):
    resident = 2 * c * n * itemsize               # x block (double-buffered)
    weights = 2 * 2 * c * c * itemsize            # m_qk + wv, double-buffered
    out = 2 * c * tn * itemsize                   # output tile, double-buffered
    scores = 3 * n * tn * 4                       # s / exp(s) / temps in f32
    small = 4 * c * tn * 4                        # kx / xe / o temporaries
    est = resident + weights + out + scores + small + (8 << 20)
    return int(min(max(est, 32 << 20), 64 << 20))


def self_attention_bcn(x_bcn, wq, wk, wv, gamma, *, col_tile=None):
    """x_bcn: (B, C, N). Returns (B, C, N)."""
    B, C, N = x_bcn.shape
    dtype = x_bcn.dtype
    itemsize = jnp.dtype(dtype).itemsize

    # Tiny weight-only precompute: M = Wq^T Wk (C, C); everything else is fused.
    m_qk = jnp.dot(wq.T.astype(jnp.float32), wk.astype(jnp.float32)).astype(dtype)
    wv_c = wv.astype(dtype)

    tn = col_tile if col_tile is not None else _pick_col_tile(N)
    assert N % tn == 0, (N, tn)
    grid = (B, N // tn)

    gamma_smem = jnp.reshape(gamma.astype(jnp.float32), (1, 1))

    return pl.pallas_call(
        _self_attention_kernel,
        out_shape=jax.ShapeDtypeStruct((B, C, N), dtype),
        grid=grid,
        in_specs=[
            # full feature map per batch element (resident across column tiles)
            pl.BlockSpec((pl.Squeezed(), C, N), lambda b, n: (b, 0, 0)),
            # Wq^T Wk (resident)
            pl.BlockSpec((C, C), lambda b, n: (0, 0)),
            # Wv (resident)
            pl.BlockSpec((C, C), lambda b, n: (0, 0)),
            # gamma scalar in SMEM
            pl.BlockSpec(memory_space=pltpu.MemorySpace.SMEM),
        ],
        out_specs=pl.BlockSpec((pl.Squeezed(), C, tn), lambda b, n: (b, 0, n)),
        compiler_params=pltpu.CompilerParams(
            dimension_semantics=("parallel", "parallel"),
            vmem_limit_bytes=_vmem_limit_bytes(C, N, tn, itemsize),
        ),
    )(x_bcn, m_qk, wv_c, gamma_smem)


def self_attention(x_nchw, wq, wk, wv, gamma, *, col_tile=None):
    """Forward pass matching SelfAttention.forward for NCHW input."""
    B, C, H, W = x_nchw.shape
    x_bcn = x_nchw.reshape(B, C, H * W)
    o = self_attention_bcn(x_bcn, wq, wk, wv, gamma, col_tile=col_tile)
    return o.reshape(B, C, H, W)


if __name__ == "__main__":
    key = jax.random.PRNGKey(0)
    B, C, H, W = 2, 32, 16, 16        # n_channels=32 -> query/key channels = 4
    Cq = C // 8

    k_x, k_q, k_k, k_v = jax.random.split(key, 4)
    x = jax.random.normal(k_x, (B, C, H, W), dtype=jnp.float32)

    # Deterministic "spectrally-normalized" 1x1 conv weights (no bias).
    wq = jax.random.normal(k_q, (Cq, C), dtype=jnp.float32) * 0.1
    wk = jax.random.normal(k_k, (Cq, C), dtype=jnp.float32) * 0.1
    wv = jax.random.normal(k_v, (C, C), dtype=jnp.float32) * 0.1
    # Module init is gamma = 0.0 (pure residual); use a nonzero gamma here so
    # the attention path is actually exercised by the numerical check.
    gamma = jnp.array([0.5], dtype=jnp.float32)

    # pure-JAX reference (mirrors the PyTorch forward exactly)
    def ref(x, wq, wk, wv, gamma):
        b, c, hh, ww = x.shape
        xf = x.reshape(b, c, hh * ww)
        f = jnp.einsum("qc,bcn->bqn", wq, xf)
        g = jnp.einsum("qc,bcn->bqn", wk, xf)
        hv = jnp.einsum("oc,bcn->bon", wv, xf)
        s = jnp.einsum("bqm,bqn->bmn", f, g)
        beta = jax.nn.softmax(s, axis=1)
        o = gamma[0] * jnp.einsum("bcm,bmn->bcn", hv, beta) + xf
        return o.reshape(b, c, hh, ww)

    r = ref(x, wq, wk, wv, gamma)

    # f32 path, auto (generation-sized) column tile.
    out = self_attention(x, wq, wk, wv, gamma)
    jax.block_until_ready(out)
    assert jnp.allclose(out, r, atol=5e-3, rtol=5e-3), float(jnp.max(jnp.abs(out - r)))

    # f32 path, forced 128-wide column tiles (exercises the multi-tile grid).
    out_t = self_attention(x, wq, wk, wv, gamma, col_tile=128)
    jax.block_until_ready(out_t)
    assert jnp.allclose(out_t, r, atol=5e-3, rtol=5e-3), float(jnp.max(jnp.abs(out_t - r)))

    # bf16 path: native low-precision MXU operands with f32 accumulation.
    out_bf = self_attention(
        x.astype(jnp.bfloat16), wq.astype(jnp.bfloat16),
        wk.astype(jnp.bfloat16), wv.astype(jnp.bfloat16), gamma)
    jax.block_until_ready(out_bf)
    err = float(jnp.max(jnp.abs(out_bf.astype(jnp.float32) - r)))
    assert jnp.allclose(out_bf.astype(jnp.float32), r, atol=7e-2, rtol=7e-2), err

    # module-init sanity check: gamma = 0 reduces to the residual path.
    gamma0 = jnp.array([0.0], dtype=jnp.float32)
    out0 = self_attention(x, wq, wk, wv, gamma0)
    jax.block_until_ready(out0)
    assert jnp.allclose(out0, x, atol=1e-6, rtol=1e-6)

    print("KERNEL_OK")
</pallas_src>

<mosaic_0001>
module attributes {stable_mosaic.version = 11 : i64} {
  func.func @_self_attention_kernel(%arg0: i32, %arg1: i32, %arg2: memref<1x32x256xf32, #tpu.memory_space<vmem>>, %arg3: memref<32x32xf32, #tpu.memory_space<vmem>>, %arg4: memref<32x32xf32, #tpu.memory_space<vmem>>, %arg5: memref<1x1xf32, #tpu.memory_space<smem>>, %arg6: memref<1x32x256xf32, #tpu.memory_space<vmem>>) attributes {dimension_semantics = [#tpu.dimension_semantics<parallel>, #tpu.dimension_semantics<parallel>], iteration_bounds = array<i64: 2, 1>, scalar_prefetch = 0 : i64, scratch_operands = 0 : i64, tpu.core_type = #tpu.core_type<tc>, window_params = [{transform_indices = @transform_0, window_bounds = array<i64: 1, 32, 256>}, {pipeline_mode = #tpu.pipeline_mode<synchronous>, transform_indices = @transform_1, window_bounds = array<i64: 32, 32>}, {pipeline_mode = #tpu.pipeline_mode<synchronous>, transform_indices = @transform_2, window_bounds = array<i64: 32, 32>}, {transform_indices = @transform_3, window_bounds = array<i64: 1, 1>}, {transform_indices = @transform_4, window_bounds = array<i64: 1, 32, 256>}]} {
    %c256_i32 = arith.constant 256 : i32
    %0 = arith.muli %arg1, %c256_i32 : i32
    %1 = tpu.assume_multiple %0, 128 : i32
    %c0 = arith.constant 0 : index
    %c0_0 = arith.constant 0 : index
    %c0_1 = arith.constant 0 : index
    %2 = vector.load %arg2[%c0, %c0_0, %c0_1] : memref<1x32x256xf32, #tpu.memory_space<vmem>>, vector<1x32x256xf32>
    %3 = vector.shape_cast %2 : vector<1x32x256xf32> to vector<32x256xf32>
    %c0_2 = arith.constant 0 : index
    %c0_3 = arith.constant 0 : index
    %4 = arith.index_cast %1 : i32 to index
    %5 = vector.load %arg2[%c0_2, %c0_3, %4] : memref<1x32x256xf32, #tpu.memory_space<vmem>>, vector<1x32x256xf32>
    %6 = vector.shape_cast %5 : vector<1x32x256xf32> to vector<32x256xf32>
    %c0_4 = arith.constant 0 : index
    %c0_5 = arith.constant 0 : index
    %7 = vector.load %arg3[%c0_4, %c0_5] : memref<32x32xf32, #tpu.memory_space<vmem>>, vector<32x32xf32>
    %cst = arith.constant dense<0.000000e+00> : vector<32x256xf32>
    %8 = tpu.matmul %7, %6, %cst {dimension_numbers = #tpu.dot_dimension_numbers<[1], [0], [0], [1], [0, 0, 1, 1], [], []>} : vector<32x32xf32>, vector<32x256xf32>, vector<32x256xf32> -> vector<32x256xf32>
    %cst_6 = arith.constant dense<0.000000e+00> : vector<256x256xf32>
    %9 = tpu.matmul %3, %8, %cst_6 {dimension_numbers = #tpu.dot_dimension_numbers<[0], [0], [1], [1], [0, 1, 1, 1], [], []>} : vector<32x256xf32>, vector<32x256xf32>, vector<256x256xf32> -> vector<256x256xf32>
    %cst_7 = arith.constant dense<0xFF800000> : vector<256xf32>
    %10 = vector.multi_reduction <maximumf>, %9, %cst_7 [0] : vector<256x256xf32> to vector<256xf32>
    %11 = vector.shape_cast %10 : vector<256xf32> to vector<1x256xf32>
    %12 = vector.broadcast %11 : vector<1x256xf32> to vector<256x256xf32>
    %13 = arith.subf %9, %12 : vector<256x256xf32>
    %14 = math.exp %13 : vector<256x256xf32>
    %cst_8 = arith.constant dense<0.000000e+00> : vector<256xf32>
    %15 = vector.multi_reduction <add>, %14, %cst_8 [0] : vector<256x256xf32> to vector<256xf32>
    %16 = vector.shape_cast %15 : vector<256xf32> to vector<1x256xf32>
    %cst_9 = arith.constant dense<0.000000e+00> : vector<32x256xf32>
    %17 = tpu.matmul %3, %14, %cst_9 {dimension_numbers = #tpu.dot_dimension_numbers<[1], [0], [0], [1], [0, 0, 1, 1], [], []>} : vector<32x256xf32>, vector<256x256xf32>, vector<32x256xf32> -> vector<32x256xf32>
    %18 = tpu.reciprocal %16 {approx = true} : vector<1x256xf32> -> vector<1x256xf32>
    %19 = vector.broadcast %18 : vector<1x256xf32> to vector<32x256xf32>
    %20 = arith.mulf %17, %19 : vector<32x256xf32>
    %c0_10 = arith.constant 0 : index
    %c0_11 = arith.constant 0 : index
    %21 = vector.load %arg4[%c0_10, %c0_11] : memref<32x32xf32, #tpu.memory_space<vmem>>, vector<32x32xf32>
    %cst_12 = arith.constant dense<0.000000e+00> : vector<32x256xf32>
    %22 = tpu.matmul %21, %20, %cst_12 {dimension_numbers = #tpu.dot_dimension_numbers<[1], [0], [0], [1], [0, 0, 1, 1], [], []>} : vector<32x32xf32>, vector<32x256xf32>, vector<32x256xf32> -> vector<32x256xf32>
    %c0_13 = arith.constant 0 : index
    %c0_14 = arith.constant 0 : index
    %23 = memref.load %arg5[%c0_13, %c0_14] : memref<1x1xf32, #tpu.memory_space<smem>>
    %24 = vector.broadcast %23 : f32 to vector<32x256xf32>
    %25 = arith.mulf %24, %22 : vector<32x256xf32>
    %26 = arith.addf %25, %6 : vector<32x256xf32>
    %c0_15 = arith.constant 0 : index
    %c0_16 = arith.constant 0 : index
    %c0_17 = arith.constant 0 : index
    %27 = vector.load %arg6[%c0_15, %c0_16, %c0_17] : memref<1x32x256xf32, #tpu.memory_space<vmem>>, vector<1x32x256xf32>
    %28 = vector.shape_cast %27 : vector<1x32x256xf32> to vector<32x256xf32>
    %29 = vector.shape_cast %26 : vector<32x256xf32> to vector<1x32x256xf32>
    tpu.vector_store %arg6[%c0_15, %c0_16, %c0_17], %29 {strides = array<i32>} : memref<1x32x256xf32, #tpu.memory_space<vmem>>, vector<1x32x256xf32>,
    return
  }
  func.func @transform_0(%arg0: i32, %arg1: i32) -> (i32, i32, i32) {
    %c0_i32 = arith.constant 0 : i32
    %c0_i32_0 = arith.constant 0 : i32
    %c0_i32_1 = arith.constant 0 : i32
    return %arg0, %c0_i32, %c0_i32_0 : i32, i32, i32
  }
  func.func @transform_1(%arg0: i32, %arg1: i32) -> (i32, i32) {
    %c0_i32 = arith.constant 0 : i32
    %c0_i32_0 = arith.constant 0 : i32
    %c0_i32_1 = arith.constant 0 : i32
    return %c0_i32, %c0_i32_0 : i32, i32
  }
  func.func @transform_2(%arg0: i32, %arg1: i32) -> (i32, i32) {
    %c0_i32 = arith.constant 0 : i32
    %c0_i32_0 = arith.constant 0 : i32
    %c0_i32_1 = arith.constant 0 : i32
    return %c0_i32, %c0_i32_0 : i32, i32
  }
  func.func @transform_3(%arg0: i32, %arg1: i32) -> (i32, i32) {
    %c0_i32 = arith.constant 0 : i32
    %c0_i32_0 = arith.constant 0 : i32
    %c0_i32_1 = arith.constant 0 : i32
    return %c0_i32, %c0_i32_0 : i32, i32
  }
  func.func @transform_4(%arg0: i32, %arg1: i32) -> (i32, i32, i32) {
    %c0_i32 = arith.constant 0 : i32
    %c0_i32_0 = arith.constant 0 : i32
    return %arg0, %c0_i32, %arg1 : i32, i32, i32
  }
}

</mosaic_0001>

<llo_original>
// kernel: tpu_custom_call.1
$region0: #{tpu_custom_call.1}
  #allocation0 [shape = 'u32[]', space=smem, size = 0x4, offset = 0x4, fixed_abs, tag = 'smem constant byte address 0x4 - core index']
  #allocation1 [shape = 'u32[144,128]{1,0:T(1,128)}', space=vmem, size = 0x12000, scoped, tag = 'internal scratch']
  #allocation2 [shape = 'f32[1,1]{1,0:T(1,128)S(6)}', space=smem, size = 0x200, scoped, tag = 'scoped memory for tpu_custom_call.1']
  %s0 = inlined_call_operand.hbm [shape: f32[2,32,256], index: 0, kind: input, shape index: {}]
  %s1 = inlined_call_operand.hbm [shape: f32[32,32], index: 1, kind: input, shape index: {}]
  %s2 = inlined_call_operand.hbm [shape: f32[32,32], index: 2, kind: input, shape index: {}]
  %s3 = inlined_call_operand.<no memory space> [shape: f32[1,1], index: 3, kind: input, shape index: {}]
  %s4 = inlined_call_operand.hbm [shape: f32[2,32,256], index: 4, kind: output, shape index: {}]
  %s5 = sld [smem:[#allocation0]]
  $region61: #{tpu_custom_call.1} parent=0
    _
  %s7 = ssub.s32 1, %s5
  %s8 = scalar_select 0, %s7, %s5
  %9 = sst [smem:[#allocation2]] %s3
  $region1: #{tpu_custom_call.1} parent=0
    #allocation3 [shape = 'u8[65536]{0}', space=vmem, size = 0x10000, scoped, tag = 'input window, operand 0']
    #allocation4 [shape = 's32[2]{0}', space=sflag, size = 0x8, scoped, tag = 'scoped memory for tpu_custom_call.1']
    #allocation5 [shape = 's32[2]{0}', space=sflag, size = 0x8, scoped, tag = 'scoped memory for tpu_custom_call.1']
    #allocation6 [shape = 'u8[16384]{0}', space=vmem, size = 0x4000, scoped, tag = 'input window, operand 1, single buffered']
    #allocation7 [shape = 's32[1]{0}', space=sflag, size = 0x4, scoped, tag = 'scoped memory for tpu_custom_call.1']
    #allocation8 [shape = 'u8[16384]{0}', space=vmem, size = 0x4000, scoped, tag = 'input window, operand 2, single buffered']
    #allocation9 [shape = 'u8[65536]{0}', space=vmem, size = 0x10000, scoped, tag = 'output window, operand 0']
    %10 = vsyncpa [#allocation4], 0
    %s11 = scalar_lea.sflag [#allocation4], 1
    %12 = vsyncpa %s11, 0
    %13 = vsyncpa [#allocation7], 0
    %14 = vsyncpa [#allocation5], 0
    %s15 = scalar_lea.sflag [#allocation5], 1
    %16 = vsyncpa %s15, 0
    loop: start=0, step=1, limit=4
    $region2: #{tpu_custom_call.1} parent=1 // loop_pre_header
      _
    $region3: #{tpu_custom_call.1} parent=1 // loop_header
      %s18 = sphi 0, %s22
      %p19 = scmp.ge.s32.totalorder %s18, 4
      %s25 = sphi 0, %s37
      %s26 = sphi 0, %s33
      %s27 = sphi 0, %s25
      %s28 = sphi 0, %s26
      %s29 = sphi 0, %s27
      %s30 = sphi 0, %s28
      %s40 = sphi 0, %s42
      %s43 = sphi 0, %s40
      %s44 = sphi 0, %s43
      %s60 = sphi 0, %s44
      %s64 = sphi 0, %s64
      %s66 = sphi 0, %s64
      %s67 = sphi 0, %s66
      %s81 = sphi 0, %s67
      %s85 = sphi 0, %s85
      %s87 = sphi 0, %s85
      %s88 = sphi 0, %s87
      %s102 = sphi 0, %s88
      %s106 = sphi 0, %s106
      %s108 = sphi 0, %s106
      %s109 = sphi 0, %s108
      %s123 = sphi 0, %s109
      %s131 = sphi 0, %s133
      %s134 = sphi 0, %s131
      %s135 = sphi 0, %s134
      %s151 = sphi 0, %s135
    $region4: #{tpu_custom_call.1} parent=1 // loop_header_branch
      %21 = sbr.rel (%p19) target = $region8
    $region5: #{tpu_custom_call.1} parent=1 // loop_body
      %s23 = ssub.s32 %s18, 1
      %s24 = ssub.s32 %s18, 2
      %s31 = sadd.s32 1, %s26
      %p32 = scmp.ge.s32.totalorder %s31, 1
      %s33 = scalar_select %p32, 0, %s31
      %s34 = sadd.s32 1, %s25
      %s35 = scalar_select %p32, %s34, %s25
      %p36 = scmp.ge.s32.totalorder %s35, 2
      %s37 = scalar_select %p36, 0, %s35
      %s38 = ssub.s32 %s25, %s37
      %p39 = scmp.eq.s32.totalorder %s38, 0
      %s41 = sadd.s32 %s40, 1
      %s42 = scalar_select %p39, %s40, %s41
      %p45 = pneg %p39
      %p46 = scmp.eq.s32.totalorder %s18, 1
      %p47 = por %p45, %p46
      %p48 = scmp.ne.s32.totalorder %s40, %s43
      %p49 = scmp.eq.s32.totalorder %s18, 0
      %p50 = por %p48, %p49
      %p51 = scmp.ne.s32.totalorder %s40, %s43
      %p52 = scmp.eq.s32.totalorder %s23, 1
      %p53 = por %p51, %p52
      %p54 = scmp.ne.s32.totalorder %s43, %s44
      %p55 = scmp.eq.s32.totalorder %s23, 0
      %p56 = por %p54, %p55
      %p57 = scmp.ne.s32.totalorder %s43, %s44
      %p58 = scmp.eq.s32.totalorder %s24, 1
      %p59 = por %p57, %p58
      %p61 = scmp.ne.s32.totalorder %s44, %s60
      %p62 = scmp.eq.s32.totalorder %s24, 0
      %p63 = por %p61, %p62
      %s65 = sadd.s32 %s64, 1
      %p68 = scmp.eq.s32.totalorder %s18, 1
      %p69 = scmp.ne.s32.totalorder %s64, %s66
      %p70 = scmp.eq.s32.totalorder %s18, 0
      %p71 = por %p69, %p70
      %p72 = scmp.ne.s32.totalorder %s64, %s66
      %p73 = scmp.eq.s32.totalorder %s23, 1
      %p74 = por %p72, %p73
      %p75 = scmp.ne.s32.totalorder %s66, %s67
      %p76 = scmp.eq.s32.totalorder %s23, 0
      %p77 = por %p75, %p76
      %p78 = scmp.ne.s32.totalorder %s66, %s67
      %p79 = scmp.eq.s32.totalorder %s24, 1
      %p80 = por %p78, %p79
      %p82 = scmp.ne.s32.totalorder %s67, %s81
      %p83 = scmp.eq.s32.totalorder %s24, 0
      %p84 = por %p82, %p83
      %s86 = sadd.s32 %s85, 1
      %p89 = scmp.eq.s32.totalorder %s18, 1
      %p90 = scmp.ne.s32.totalorder %s85, %s87
      %p91 = scmp.eq.s32.totalorder %s18, 0
      %p92 = por %p90, %p91
      %p93 = scmp.ne.s32.totalorder %s85, %s87
      %p94 = scmp.eq.s32.totalorder %s23, 1
      %p95 = por %p93, %p94
      %p96 = scmp.ne.s32.totalorder %s87, %s88
      %p97 = scmp.eq.s32.totalorder %s23, 0
      %p98 = por %p96, %p97
      %p99 = scmp.ne.s32.totalorder %s87, %s88
      %p100 = scmp.eq.s32.totalorder %s24, 1
      %p101 = por %p99, %p100
      %p103 = scmp.ne.s32.totalorder %s88, %s102
      %p104 = scmp.eq.s32.totalorder %s24, 0
      %p105 = por %p103, %p104
      %s107 = sadd.s32 %s106, 1
      %p110 = scmp.eq.s32.totalorder %s18, 1
      %p111 = scmp.ne.s32.totalorder %s106, %s108
      %p112 = scmp.eq.s32.totalorder %s18, 0
      %p113 = por %p111, %p112
      %p114 = scmp.ne.s32.totalorder %s106, %s108
      %p115 = scmp.eq.s32.totalorder %s23, 1
      %p116 = por %p114, %p115
      %p117 = scmp.ne.s32.totalorder %s108, %s109
      %p118 = scmp.eq.s32.totalorder %s23, 0
      %p119 = por %p117, %p118
      %p120 = scmp.ne.s32.totalorder %s108, %s109
      %p121 = scmp.eq.s32.totalorder %s24, 1
      %p122 = por %p120, %p121
      %p124 = scmp.ne.s32.totalorder %s109, %s123
      %p125 = scmp.eq.s32.totalorder %s24, 0
      %p126 = por %p124, %p125
      %s127 = ssub.s32 %s25, %s37
      %s128 = ssub.s32 %s26, %s33
      %s129 = sor.u32 %s127, %s128
      %p130 = scmp.eq.s32.totalorder %s129, 0
      %s132 = sadd.s32 %s131, 1
      %s133 = scalar_select %p130, %s131, %s132
      %p136 = pneg %p130
      %p137 = scmp.eq.s32.totalorder %s18, 1
      %p138 = por %p136, %p137
      %p139 = scmp.ne.s32.totalorder %s131, %s134
      %p140 = scmp.eq.s32.totalorder %s18, 0
      %p141 = por %p139, %p140
      %p142 = scmp.ne.s32.totalorder %s131, %s134
      %p143 = scmp.eq.s32.totalorder %s23, 1
      %p144 = por %p142, %p143
      %p145 = scmp.ne.s32.totalorder %s134, %s135
      %p146 = scmp.eq.s32.totalorder %s23, 0
      %p147 = por %p145, %p146
      %p148 = scmp.ne.s32.totalorder %s134, %s135
      %p149 = scmp.eq.s32.totalorder %s24, 1
      %p150 = por %p148, %p149
      %p152 = scmp.ne.s32.totalorder %s135, %s151
      %p153 = scmp.eq.s32.totalorder %s24, 0
      %p154 = por %p152, %p153
      %p155 = scmp.le.s32.totalorder 1, %s18
      %p156 = scmp.lt.s32.totalorder %s18, 3
      %p157 = pnand %p155, %p156
      %p158 = pneg %p157
      // Predicated region
      $region9: #{tpu_custom_call.1} parent=5 // pred_check
        _
      $region10: #{tpu_custom_call.1} parent=5 // pred_check_branch
        %160 = sbr.rel (%p157) target = $region12
      $region11: #{tpu_custom_call.1} parent=5 // pred_region
        %s161 = ssub.s32 %s18, 1
        // Predicated region
        $region13: #{tpu_custom_call.1} parent=11 // pred_check
          %p162 = pneg %p77
        $region14: #{tpu_custom_call.1} parent=11 // pred_check_branch
          %164 = sbr.rel (%p162) target = $region16
        $region15: #{tpu_custom_call.1} parent=11 // pred_region
          %s166 = ssub.s32 512, 512
          %167 = vsyncadd [#allocation7], %s166
          %s168 = sshll.u32 [#allocation6], 4
          %s169 = int_to_ptr.vmem [resolvable:$true] %s168
          %174 = dma.hbm_to_vmem [thread:$0]  %s1, 512, %s169, [#allocation7], 128, 128, 8
        $region16: #{tpu_custom_call.1} parent=11 // pred_fallthru
          _
        // Predicated region
        $region17: #{tpu_custom_call.1} parent=11 // pred_check
          %p175 = pneg %p98
        $region18: #{tpu_custom_call.1} parent=11 // pred_check_branch
          %177 = sbr.rel (%p175) target = $region20
        $region19: #{tpu_custom_call.1} parent=11 // pred_region
          %s179 = ssub.s32 512, 512
          %180 = vsyncadd [#allocation7], %s179
          %s181 = sshll.u32 [#allocation8], 4
          %s182 = int_to_ptr.vmem [resolvable:$true] %s181
          %187 = dma.hbm_to_vmem [thread:$0]  %s2, 512, %s182, [#allocation7], 128, 128, 8
        $region20: #{tpu_custom_call.1} parent=11 // pred_fallthru
          _
        // Predicated region
        $region21: #{tpu_custom_call.1} parent=11 // pred_check
          %p188 = pneg %p119
        $region22: #{tpu_custom_call.1} parent=11 // pred_check_branch
          %190 = sbr.rel (%p188) target = $region24
        $region23: #{tpu_custom_call.1} parent=11 // pred_region
          _
        $region24: #{tpu_custom_call.1} parent=11 // pred_fallthru
          _
      $region12: #{tpu_custom_call.1} parent=5 // pred_fallthru
        _
      %p191 = scmp.lt.s32.totalorder %s18, 2
      // Predicated region
      $region25: #{tpu_custom_call.1} parent=5 // pred_check
        %p192 = pneg %p191
      $region26: #{tpu_custom_call.1} parent=5 // pred_check_branch
        %194 = sbr.rel (%p192) target = $region28
      $region27: #{tpu_custom_call.1} parent=5 // pred_region
        // Predicated region
        $region29: #{tpu_custom_call.1} parent=27 // pred_check
          %p195 = pneg %p50
        $region30: #{tpu_custom_call.1} parent=27 // pred_check_branch
          %197 = sbr.rel (%p195) target = $region32
        $region31: #{tpu_custom_call.1} parent=27 // pred_region
          %s198 = sand.u32 %s40, 1
          %s199 = scalar_lea.sflag [#allocation4], %s198
          %s200 = sand.u32 %s40, 1
          %s201 = smul.addr %s200, 64
          %s202 = scalar_lea.vmem [#allocation3], %s201
          %s204 = ssub.s32 1024, 1024
          %205 = vsyncadd %s199, %s204
          %s206 = smul.addr %s25, 8
          %s207 = smul.addr %s206, 128
          %s208 = scalar_lea.hbm %s0, %s207
          %s209 = sshll.u32 %s202, 4
          %s210 = int_to_ptr.vmem [resolvable:$true] %s209
          %215 = dma.hbm_to_vmem [thread:$0]  %s208, 1024, %s210, %s199, 256, 256, 16
        $region32: #{tpu_custom_call.1} parent=27 // pred_fallthru
          _
      $region28: #{tpu_custom_call.1} parent=5 // pred_fallthru
        _
      %p216 = scmp.le.s32.totalorder 1, %s18
      %p217 = scmp.lt.s32.totalorder %s18, 3
      %p218 = pnand %p216, %p217
      %p219 = pneg %p218
      // Predicated region
      $region33: #{tpu_custom_call.1} parent=5 // pred_check
        _
      $region34: #{tpu_custom_call.1} parent=5 // pred_check_branch
        %221 = sbr.rel (%p218) target = $region36
      $region35: #{tpu_custom_call.1} parent=5 // pred_region
        %s222 = ssub.s32 %s18, 1
        %s223 = sand.u32 %s43, 1
        %s224 = scalar_lea.sflag [#allocation4], %s223
        %s225 = sand.u32 %s43, 1
        %s226 = smul.addr %s225, 64
        %s227 = scalar_lea.vmem [#allocation3], %s226
        // Predicated region
        $region37: #{tpu_custom_call.1} parent=35 // pred_check
          %p228 = pneg %p56
        $region38: #{tpu_custom_call.1} parent=35 // pred_check_branch
          %230 = sbr.rel (%p228) target = $region40
        $region39: #{tpu_custom_call.1} parent=35 // pred_region
          %231 = dma.done %s224, 1024
        $region40: #{tpu_custom_call.1} parent=35 // pred_fallthru
          _
        // Predicated region
        $region41: #{tpu_custom_call.1} parent=35 // pred_check
          %p232 = pneg %p77
        $region42: #{tpu_custom_call.1} parent=35 // pred_check_branch
          %234 = sbr.rel (%p232) target = $region44
        $region43: #{tpu_custom_call.1} parent=35 // pred_region
          %235 = dma.done [#allocation7], 512
        $region44: #{tpu_custom_call.1} parent=35 // pred_fallthru
          _
        // Predicated region
        $region45: #{tpu_custom_call.1} parent=35 // pred_check
          %p236 = pneg %p98
        $region46: #{tpu_custom_call.1} parent=35 // pred_check_branch
          %238 = sbr.rel (%p236) target = $region48
        $region47: #{tpu_custom_call.1} parent=35 // pred_region
          %239 = dma.done [#allocation7], 512
        $region48: #{tpu_custom_call.1} parent=35 // pred_fallthru
          _
        %s240 = sand.u32 %s43, 1
        %s241 = scalar_lea.sflag [#allocation4], %s240
        %s242 = sand.u32 %s43, 1
        %s243 = smul.addr %s242, 64
        %s244 = scalar_lea.vmem [#allocation3], %s243
        %p245 = pneg %p56
        %p246 = pneg %p53
        %p247 = pneg %p77
        %p248 = pneg %p74
        %p249 = pneg %p98
        %p250 = pneg %p95
        %p251 = pneg %p119
        %p252 = pneg %p116
        %p253 = pneg %p147
        %p254 = pneg %p144
        %s255 = sand.u32 %s134, 1
        %s256 = scalar_lea.sflag [#allocation5], %s255
        %s257 = sand.u32 %s134, 1
        %s258 = smul.addr %s257, 64
        %s259 = scalar_lea.vmem [#allocation9], %s258
        %s260 = smul.u32 2, %s28
        %s261 = smul.u32 %s28, 256
        %v262 = vld [vmem:[%s227] sm:$0xff]
        %v263 = vld [vmem:[%s227 + $0x8] sm:$0xff]
        %v264 = vld [vmem:[%s227 + $0x10] sm:$0xff]
        %v265 = vld [vmem:[%s227 + $0x18] sm:$0xff]
        %v266 = vld [vmem:[%s227 + $0x20] sm:$0xff]
        %v267 = vld [vmem:[%s227 + $0x28] sm:$0xff]
        %v268 = vld [vmem:[%s227 + $0x30] sm:$0xff]
        %v269 = vld [vmem:[%s227 + $0x38] sm:$0xff]
        %s270 = sshra.s32 %s261, 7
        %s271 = sand.u32 %s261, 127
        %s272 = smul.addr %s270, 8
        %s273 = scalar_lea.vmem %s227, %s272 [#allocation3]
        %v274 = vld [vmem:[%s273] sm:$0xff]
        %v275 = vld [vmem:[%s273 + $0x8] sm:$0xff]
        %v276 = vld [vmem:[%s273 + $0x10] sm:$0xff]
        %v277 = vld [vmem:[%s273 + $0x18] sm:$0xff]
        %v278 = vld [vmem:[%s273 + $0x20] sm:$0xff]
        %v279 = vld [vmem:[%s273 + $0x28] sm:$0xff]
        %v280 = vld [vmem:[%s273 + $0x30] sm:$0xff]
        %v281 = vld [vmem:[%s273 + $0x38] sm:$0xff]
        %v282 = vld [vmem:[#allocation6] sm:$0xff]
        %v283 = vld [vmem:[#allocation6 + $0x8] sm:$0xff]
        %v284 = vld [vmem:[#allocation6 + $0x10] sm:$0xff]
        %v285 = vld [vmem:[#allocation6 + $0x18] sm:$0xff]
        %vm286 = vcmask 261120
        %v288 = vsel %vm286, %v282, 0
        %v291 = vsel %vm286, %v283, 0
        %v294 = vsel %vm286, %v284, 0
        %v297 = vsel %vm286, %v285, 0
        %299 = vmatprep.subr.mxu0 %v275
        %300 = vmatpush1.msra.mxu0 %v274
        %301 = vmatprep.subr.mxu0 %v277
        %302 = vmatpush1.msra.mxu0 %v276
        %303 = vmatprep.subr.mxu0 %v279
        %304 = vmatpush1.msra.mxu0 %v278
        %305 = vmatprep.subr.mxu0 %v281
        %306 = vmatpush1.msra.mxu0 %v280
        %307 = vmatprep.subr.mxu0 0.0
        %308 = vmatpush1.msra.mxu0 0.0
        %309 = vmatprep.subr.mxu0 0.0
        %310 = vmatpush1.msra.mxu0 0.0
        %311 = vmatprep.subr.mxu0 0.0
        %312 = vmatpush1.msra.mxu0 0.0
        %313 = vmatprep.subr.mxu0 0.0
        %314 = vmatpush1.msra.mxu0 0.0
        %315 = vmatprep.subr.mxu0 0.0
        %316 = vmatpush1.msra.mxu0 0.0
        %317 = vmatprep.subr.mxu0 0.0
        %318 = vmatpush1.msra.mxu0 0.0
        %319 = vmatprep.subr.mxu0 0.0
        %320 = vmatpush1.msra.mxu0 0.0
        %321 = vmatprep.subr.mxu0 0.0
        %322 = vmatpush1.msra.mxu0 0.0
        %323 = vmatprep.subr.mxu0 0.0
        %324 = vmatpush1.msra.mxu0 0.0
        %325 = vmatprep.subr.mxu0 0.0
        %326 = vmatpush1.msra.mxu0 0.0
        %327 = vmatprep.subr.mxu0 0.0
        %328 = vmatpush1.msra.mxu0 0.0
        %329 = vmatprep.subr.mxu0 0.0
        %330 = vmatpush1.msra.mxu0 0.0
        %331 = vmatprep.subr.mxu0 0.0
        %332 = vmatpush1.msra.mxu0 0.0
        %333 = vmatprep.subr.mxu0 0.0
        %334 = vmatpush1.msra.mxu0 0.0
        %335 = vmatprep.subr.mxu0 0.0
        %336 = vmatpush1.msra.mxu0 0.0
        %337 = vmatprep.subr.mxu0 0.0
        %338 = vmatpush1.msra.mxu0 0.0
        %339 = vmatprep.subr.mxu0 0.0
        %340 = vmatpush1.msra.mxu0 0.0
        %341 = vmatprep.subr.mxu0 0.0
        %342 = vmatpush1.msra.mxu0 0.0
        %343 = vmatprep.subr.mxu0 0.0
        %344 = vmatpush1.msra.mxu0 0.0
        %345 = vmatprep.subr.mxu0 0.0
        %346 = vmatpush1.msra.mxu0 0.0
        %347 = vmatprep.subr.mxu0 0.0
        %348 = vmatpush1.msra.mxu0 0.0
        %349 = vmatprep.subr.mxu0 0.0
        %350 = vmatpush1.msra.mxu0 0.0
        %351 = vmatprep.subr.mxu0 0.0
        %352 = vmatpush1.msra.mxu0 0.0
        %353 = vmatprep.subr.mxu0 0.0
        %354 = vmatpush1.msra.mxu0 0.0
        %355 = vmatprep.subr.mxu0 0.0
        %356 = vmatpush1.msra.mxu0 0.0
        %357 = vmatprep.subr.mxu0 0.0
        %358 = vmatpush1.msra.mxu0 0.0
        %359 = vmatprep.subr.mxu0 0.0
        %360 = vmatpush1.msra.mxu0 0.0
        %361 = vmatprep.subr.mxu0 0.0
        %362 = vmatpush1.msra.mxu0 0.0
        %363 = vmatprep.mubr.f32.mxu0 0.0
        %364 = vmatmul.mubr.f32.gmra.mrb[0].mxu0 %v288
        %v365 = vpop.f32.mrb[0].mxu0
        %v366 = vadd.f32 0.0, %v365
        %v367 = vpop.f32.mrb[0].mxu0
        %v368 = vadd.f32 0.0, %v367
        %369 = vmatprep.mubr.f32.mxu0 0.0
        %370 = vmatmul.mubr.f32.gmra.mrb[0].mxu0 %v291
        %v371 = vpop.f32.mrb[0].mxu0
        %v372 = vadd.f32 0.0, %v371
        %v373 = vpop.f32.mrb[0].mxu0
        %v374 = vadd.f32 0.0, %v373
        %375 = vmatprep.mubr.f32.mxu0 0.0
        %376 = vmatmul.mubr.f32.gmra.mrb[0].mxu0 %v294
        %v377 = vpop.f32.mrb[0].mxu0
        %v378 = vadd.f32 0.0, %v377
        %v379 = vpop.f32.mrb[0].mxu0
        %v380 = vadd.f32 0.0, %v379
        %381 = vmatprep.mubr.f32.mxu0 0.0
        %382 = vmatmul.mubr.f32.gmra.mrb[0].mxu0 %v297
        %v383 = vpop.f32.mrb[0].mxu0
        %v384 = vadd.f32 0.0, %v383
        %v385 = vpop.f32.mrb[0].mxu0
        %v386 = vadd.f32 0.0, %v385
        %387 = vdwg.mxu0
        %388 = vxpose.xlu0.b32.start [1/16] %v262, 128
        %389 = vxpose.xlu0.b32.cont [2/16] %v264, 128
        %390 = vxpose.xlu0.b32.cont [3/16] %v266, 128
        %391 = vxpose.xlu0.b32.cont [4/16] %v268, 128
        %392 = vxpose.xlu0.b32.cont [5/16] 0.0, 128
        %393 = vxpose.xlu0.b32.cont [6/16] 0.0, 128
        %394 = vxpose.xlu0.b32.cont [7/16] 0.0, 128
        %395 = vxpose.xlu0.b32.cont [8/16] 0.0, 128
        %396 = vxpose.xlu0.b32.cont [9/16] 0.0, 128
        %397 = vxpose.xlu0.b32.cont [10/16] 0.0, 128
        %398 = vxpose.xlu0.b32.cont [11/16] 0.0, 128
        %399 = vxpose.xlu0.b32.cont [12/16] 0.0, 128
        %400 = vxpose.xlu0.b32.cont [13/16] 0.0, 128
        %401 = vxpose.xlu0.b32.cont [14/16] 0.0, 128
        %402 = vxpose.xlu0.b32.cont [15/16] 0.0, 128
        %403 = vxpose.xlu0.b32.end [16/16] 0.0, 128
        %v404 = vpop.trf.xlu0
        %v405 = vpop.trf.xlu0
        %v406 = vpop.trf.xlu0
        %v407 = vpop.trf.xlu0
        %v408 = vpop.trf.xlu0
        %v409 = vpop.trf.xlu0
        %v410 = vpop.trf.xlu0
        %v411 = vpop.trf.xlu0
        %v412 = vpop.trf.xlu0
        %v413 = vpop.trf.xlu0
        %v414 = vpop.trf.xlu0
        %v415 = vpop.trf.xlu0
        %v416 = vpop.trf.xlu0
        %v417 = vpop.trf.xlu0
        %v418 = vpop.trf.xlu0
        %v419 = vpop.trf.xlu0
        %420 = vxpose.xlu0.b32.start [1/16] %v263, 128
        %421 = vxpose.xlu0.b32.cont [2/16] %v265, 128
        %422 = vxpose.xlu0.b32.cont [3/16] %v267, 128
        %423 = vxpose.xlu0.b32.cont [4/16] %v269, 128
        %424 = vxpose.xlu0.b32.cont [5/16] 0.0, 128
        %425 = vxpose.xlu0.b32.cont [6/16] 0.0, 128
        %426 = vxpose.xlu0.b32.cont [7/16] 0.0, 128
        %427 = vxpose.xlu0.b32.cont [8/16] 0.0, 128
        %428 = vxpose.xlu0.b32.cont [9/16] 0.0, 128
        %429 = vxpose.xlu0.b32.cont [10/16] 0.0, 128
        %430 = vxpose.xlu0.b32.cont [11/16] 0.0, 128
        %431 = vxpose.xlu0.b32.cont [12/16] 0.0, 128
        %432 = vxpose.xlu0.b32.cont [13/16] 0.0, 128
        %433 = vxpose.xlu0.b32.cont [14/16] 0.0, 128
        %434 = vxpose.xlu0.b32.cont [15/16] 0.0, 128
        %435 = vxpose.xlu0.b32.end [16/16] 0.0, 128
        %v436 = vpop.trf.xlu0
        %v437 = vpop.trf.xlu0
        %v438 = vpop.trf.xlu0
        %v439 = vpop.trf.xlu0
        %v440 = vpop.trf.xlu0
        %v441 = vpop.trf.xlu0
        %v442 = vpop.trf.xlu0
        %v443 = vpop.trf.xlu0
        %v444 = vpop.trf.xlu0
        %v445 = vpop.trf.xlu0
        %v446 = vpop.trf.xlu0
        %v447 = vpop.trf.xlu0
        %v448 = vpop.trf.xlu0
        %v449 = vpop.trf.xlu0
        %v450 = vpop.trf.xlu0
        %v451 = vpop.trf.xlu0
        %v453 = vsel %vm286, %v404, 0
        %v456 = vsel %vm286, %v405, 0
        %v459 = vsel %vm286, %v406, 0
        %v462 = vsel %vm286, %v407, 0
        %v465 = vsel %vm286, %v408, 0
        %v468 = vsel %vm286, %v409, 0
        %v471 = vsel %vm286, %v410, 0
        %v474 = vsel %vm286, %v411, 0
        %v477 = vsel %vm286, %v412, 0
        %v480 = vsel %vm286, %v413, 0
        %v483 = vsel %vm286, %v414, 0
        %v486 = vsel %vm286, %v415, 0
        %v489 = vsel %vm286, %v416, 0
        %v492 = vsel %vm286, %v417, 0
        %v495 = vsel %vm286, %v418, 0
        %v498 = vsel %vm286, %v419, 0
        %v501 = vsel %vm286, %v436, 0
        %v504 = vsel %vm286, %v437, 0
        %v507 = vsel %vm286, %v438, 0
        %v510 = vsel %vm286, %v439, 0
        %v513 = vsel %vm286, %v440, 0
        %v516 = vsel %vm286, %v441, 0
        %v519 = vsel %vm286, %v442, 0
        %v522 = vsel %vm286, %v443, 0
        %v525 = vsel %vm286, %v444, 0
        %v528 = vsel %vm286, %v445, 0
        %v531 = vsel %vm286, %v446, 0
        %v534 = vsel %vm286, %v447, 0
        %v537 = vsel %vm286, %v448, 0
        %v540 = vsel %vm286, %v449, 0
        %v543 = vsel %vm286, %v450, 0
        %v546 = vsel %vm286, %v451, 0
        %548 = vmatprep.subr.mxu0 %v368
        %549 = vmatpush1.msra.mxu0 %v366
        %550 = vmatprep.subr.mxu0 %v374
        %551 = vmatpush1.msra.mxu0 %v372
        %552 = vmatprep.subr.mxu0 %v380
        %553 = vmatpush1.msra.mxu0 %v378
        %554 = vmatprep.subr.mxu0 %v386
        %555 = vmatpush1.msra.mxu0 %v384
        %556 = vmatprep.subr.mxu0 0.0
        %557 = vmatpush1.msra.mxu0 0.0
        %558 = vmatprep.subr.mxu0 0.0
        %559 = vmatpush1.msra.mxu0 0.0
        %560 = vmatprep.subr.mxu0 0.0
        %561 = vmatpush1.msra.mxu0 0.0
        %562 = vmatprep.subr.mxu0 0.0
        %563 = vmatpush1.msra.mxu0 0.0
        %564 = vmatprep.subr.mxu0 0.0
        %565 = vmatpush1.msra.mxu0 0.0
        %566 = vmatprep.subr.mxu0 0.0
        %567 = vmatpush1.msra.mxu0 0.0
        %568 = vmatprep.subr.mxu0 0.0
        %569 = vmatpush1.msra.mxu0 0.0
        %570 = vmatprep.subr.mxu0 0.0
        %571 = vmatpush1.msra.mxu0 0.0
        %572 = vmatprep.subr.mxu0 0.0
        %573 = vmatpush1.msra.mxu0 0.0
        %574 = vmatprep.subr.mxu0 0.0
        %575 = vmatpush1.msra.mxu0 0.0
        %576 = vmatprep.subr.mxu0 0.0
        %577 = vmatpush1.msra.mxu0 0.0
        %578 = vmatprep.subr.mxu0 0.0
        %579 = vmatpush1.msra.mxu0 0.0
        %580 = vmatprep.subr.mxu0 0.0
        %581 = vmatpush1.msra.mxu0 0.0
        %582 = vmatprep.subr.mxu0 0.0
        %583 = vmatpush1.msra.mxu0 0.0
        %584 = vmatprep.subr.mxu0 0.0
        %585 = vmatpush1.msra.mxu0 0.0
        %586 = vmatprep.subr.mxu0 0.0
        %587 = vmatpush1.msra.mxu0 0.0
        %588 = vmatprep.subr.mxu0 0.0
        %589 = vmatpush1.msra.mxu0 0.0
        %590 = vmatprep.subr.mxu0 0.0
        %591 = vmatpush1.msra.mxu0 0.0
        %592 = vmatprep.subr.mxu0 0.0
        %593 = vmatpush1.msra.mxu0 0.0
        %594 = vmatprep.subr.mxu0 0.0
        %595 = vmatpush1.msra.mxu0 0.0
        %596 = vmatprep.subr.mxu0 0.0
        %597 = vmatpush1.msra.mxu0 0.0
        %598 = vmatprep.subr.mxu0 0.0
        %599 = vmatpush1.msra.mxu0 0.0
        %600 = vmatprep.subr.mxu0 0.0
        %601 = vmatpush1.msra.mxu0 0.0
        %602 = vmatprep.subr.mxu0 0.0
        %603 = vmatpush1.msra.mxu0 0.0
        %604 = vmatprep.subr.mxu0 0.0
        %605 = vmatpush1.msra.mxu0 0.0
        %606 = vmatprep.subr.mxu0 0.0
        %607 = vmatpush1.msra.mxu0 0.0
        %608 = vmatprep.subr.mxu0 0.0
        %609 = vmatpush1.msra.mxu0 0.0
        %610 = vmatprep.subr.mxu0 0.0
        %611 = vmatpush1.msra.mxu0 0.0
        %612 = vmatprep.mubr.f32.mxu0 0.0
        %613 = vmatmul.mubr.f32.gmra.mrb[0].mxu0 %v453
        %v614 = vpop.f32.mrb[0].mxu0
        %v615 = vadd.f32 0.0, %v614
        %v616 = vpop.f32.mrb[0].mxu0
        %v617 = vadd.f32 0.0, %v616
        %618 = vmatprep.mubr.f32.mxu0 0.0
        %619 = vmatmul.mubr.f32.gmra.mrb[0].mxu0 %v456
        %v620 = vpop.f32.mrb[0].mxu0
        %v621 = vadd.f32 0.0, %v620
        %v622 = vpop.f32.mrb[0].mxu0
        %v623 = vadd.f32 0.0, %v622
        %624 = vmatprep.mubr.f32.mxu0 0.0
        %625 = vmatmul.mubr.f32.gmra.mrb[0].mxu0 %v459
        %v626 = vpop.f32.mrb[0].mxu0
        %v627 = vadd.f32 0.0, %v626
        %v628 = vpop.f32.mrb[0].mxu0
        %v629 = vadd.f32 0.0, %v628
        %630 = vmatprep.mubr.f32.mxu0 0.0
        %631 = vmatmul.mubr.f32.gmra.mrb[0].mxu0 %v462
        %v632 = vpop.f32.mrb[0].mxu0
        %v633 = vadd.f32 0.0, %v632
        %v634 = vpop.f32.mrb[0].mxu0
        %v635 = vadd.f32 0.0, %v634
        %636 = vmatprep.mubr.f32.mxu0 0.0
        %637 = vmatmul.mubr.f32.gmra.mrb[0].mxu0 %v465
        %v638 = vpop.f32.mrb[0].mxu0
        %v639 = vadd.f32 0.0, %v638
        %v640 = vpop.f32.mrb[0].mxu0
        %v641 = vadd.f32 0.0, %v640
        %642 = vmatprep.mubr.f32.mxu0 0.0
        %643 = vmatmul.mubr.f32.gmra.mrb[0].mxu0 %v468
        %v644 = vpop.f32.mrb[0].mxu0
        %v645 = vadd.f32 0.0, %v644
        %v646 = vpop.f32.mrb[0].mxu0
        %v647 = vadd.f32 0.0, %v646
        %648 = vmatprep.mubr.f32.mxu0 0.0
        %649 = vmatmul.mubr.f32.gmra.mrb[0].mxu0 %v471
        %v650 = vpop.f32.mrb[0].mxu0
        %v651 = vadd.f32 0.0, %v650
        %v652 = vpop.f32.mrb[0].mxu0
        %v653 = vadd.f32 0.0, %v652
        %654 = vmatprep.mubr.f32.mxu0 0.0
        %655 = vmatmul.mubr.f32.gmra.mrb[0].mxu0 %v474
        %v656 = vpop.f32.mrb[0].mxu0
        %v657 = vadd.f32 0.0, %v656
        %v658 = vpop.f32.mrb[0].mxu0
        %v659 = vadd.f32 0.0, %v658
        %660 = vmatprep.mubr.f32.mxu0 0.0
        %661 = vmatmul.mubr.f32.gmra.mrb[0].mxu0 %v477
        %v662 = vpop.f32.mrb[0].mxu0
        %v663 = vadd.f32 0.0, %v662
        %v664 = vpop.f32.mrb[0].mxu0
        %v665 = vadd.f32 0.0, %v664
        %666 = vmatprep.mubr.f32.mxu0 0.0
        %667 = vmatmul.mubr.f32.gmra.mrb[0].mxu0 %v480
        %v668 = vpop.f32.mrb[0].mxu0
        %v669 = vadd.f32 0.0, %v668
        %v670 = vpop.f32.mrb[0].mxu0
        %v671 = vadd.f32 0.0, %v670
        %672 = vmatprep.mubr.f32.mxu0 0.0
        %673 = vmatmul.mubr.f32.gmra.mrb[0].mxu0 %v483
        %v674 = vpop.f32.mrb[0].mxu0
        %v675 = vadd.f32 0.0, %v674
        %v676 = vpop.f32.mrb[0].mxu0
        %v677 = vadd.f32 0.0, %v676
        %678 = vmatprep.mubr.f32.mxu0 0.0
        %679 = vmatmul.mubr.f32.gmra.mrb[0].mxu0 %v486
        %v680 = vpop.f32.mrb[0].mxu0
        %v681 = vadd.f32 0.0, %v680
        %v682 = vpop.f32.mrb[0].mxu0
        %v683 = vadd.f32 0.0, %v682
        %684 = vmatprep.mubr.f32.mxu0 0.0
        %685 = vmatmul.mubr.f32.gmra.mrb[0].mxu0 %v489
        %v686 = vpop.f32.mrb[0].mxu0
        %v687 = vadd.f32 0.0, %v686
        %v688 = vpop.f32.mrb[0].mxu0
        %v689 = vadd.f32 0.0, %v688
        %690 = vmatprep.mubr.f32.mxu0 0.0
        %691 = vmatmul.mubr.f32.gmra.mrb[0].mxu0 %v492
        %v692 = vpop.f32.mrb[0].mxu0
        %v693 = vadd.f32 0.0, %v692
        %v694 = vpop.f32.mrb[0].mxu0
        %v695 = vadd.f32 0.0, %v694
        %696 = vmatprep.mubr.f32.mxu0 0.0
        %697 = vmatmul.mubr.f32.gmra.mrb[0].mxu0 %v495
        %v698 = vpop.f32.mrb[0].mxu0
        %v699 = vadd.f32 0.0, %v698
        %v700 = vpop.f32.mrb[0].mxu0
        %v701 = vadd.f32 0.0, %v700
        %702 = vmatprep.mubr.f32.mxu0 0.0
        %703 = vmatmul.mubr.f32.gmra.mrb[0].mxu0 %v498
        %v704 = vpop.f32.mrb[0].mxu0
        %v705 = vadd.f32 0.0, %v704
        %v706 = vpop.f32.mrb[0].mxu0
        %v707 = vadd.f32 0.0, %v706
        %708 = vmatprep.mubr.f32.mxu0 0.0
        %709 = vmatmul.mubr.f32.gmra.mrb[0].mxu0 %v501
        %v710 = vpop.f32.mrb[0].mxu0
        %v711 = vadd.f32 0.0, %v710
        %v712 = vpop.f32.mrb[0].mxu0
        %v713 = vadd.f32 0.0, %v712
        %714 = vmatprep.mubr.f32.mxu0 0.0
        %715 = vmatmul.mubr.f32.gmra.mrb[0].mxu0 %v504
        %v716 = vpop.f32.mrb[0].mxu0
        %v717 = vadd.f32 0.0, %v716
        %v718 = vpop.f32.mrb[0].mxu0
        %v719 = vadd.f32 0.0, %v718
        %720 = vmatprep.mubr.f32.mxu0 0.0
        %721 = vmatmul.mubr.f32.gmra.mrb[0].mxu0 %v507
        %v722 = vpop.f32.mrb[0].mxu0
        %v723 = vadd.f32 0.0, %v722
        %v724 = vpop.f32.mrb[0].mxu0
        %v725 = vadd.f32 0.0, %v724
        %726 = vmatprep.mubr.f32.mxu0 0.0
        %727 = vmatmul.mubr.f32.gmra.mrb[0].mxu0 %v510
        %v728 = vpop.f32.mrb[0].mxu0
        %v729 = vadd.f32 0.0, %v728
        %v730 = vpop.f32.mrb[0].mxu0
        %v731 = vadd.f32 0.0, %v730
        %732 = vmatprep.mubr.f32.mxu0 0.0
        %733 = vmatmul.mubr.f32.gmra.mrb[0].mxu0 %v513
        %v734 = vpop.f32.mrb[0].mxu0
        %v735 = vadd.f32 0.0, %v734
        %v736 = vpop.f32.mrb[0].mxu0
        %v737 = vadd.f32 0.0, %v736
        %738 = vmatprep.mubr.f32.mxu0 0.0
        %739 = vmatmul.mubr.f32.gmra.mrb[0].mxu0 %v516
        %v740 = vpop.f32.mrb[0].mxu0
        %v741 = vadd.f32 0.0, %v740
        %v742 = vpop.f32.mrb[0].mxu0
        %v743 = vadd.f32 0.0, %v742
        %744 = vmatprep.mubr.f32.mxu0 0.0
        %745 = vmatmul.mubr.f32.gmra.mrb[0].mxu0 %v519
        %v746 = vpop.f32.mrb[0].mxu0
        %v747 = vadd.f32 0.0, %v746
        %v748 = vpop.f32.mrb[0].mxu0
        %v749 = vadd.f32 0.0, %v748
        %750 = vmatprep.mubr.f32.mxu0 0.0
        %751 = vmatmul.mubr.f32.gmra.mrb[0].mxu0 %v522
        %v752 = vpop.f32.mrb[0].mxu0
        %v753 = vadd.f32 0.0, %v752
        %v754 = vpop.f32.mrb[0].mxu0
        %v755 = vadd.f32 0.0, %v754
        %756 = vmatprep.mubr.f32.mxu0 0.0
        %757 = vmatmul.mubr.f32.gmra.mrb[0].mxu0 %v525
        %v758 = vpop.f32.mrb[0].mxu0
        %v759 = vadd.f32 0.0, %v758
        %v760 = vpop.f32.mrb[0].mxu0
        %v761 = vadd.f32 0.0, %v760
        %762 = vmatprep.mubr.f32.mxu0 0.0
        %763 = vmatmul.mubr.f32.gmra.mrb[0].mxu0 %v528
        %v764 = vpop.f32.mrb[0].mxu0
        %v765 = vadd.f32 0.0, %v764
        %v766 = vpop.f32.mrb[0].mxu0
        %v767 = vadd.f32 0.0, %v766
        %768 = vmatprep.mubr.f32.mxu0 0.0
        %769 = vmatmul.mubr.f32.gmra.mrb[0].mxu0 %v531
        %v770 = vpop.f32.mrb[0].mxu0
        %v771 = vadd.f32 0.0, %v770
        %v772 = vpop.f32.mrb[0].mxu0
        %v773 = vadd.f32 0.0, %v772
        %774 = vmatprep.mubr.f32.mxu0 0.0
        %775 = vmatmul.mubr.f32.gmra.mrb[0].mxu0 %v534
        %v776 = vpop.f32.mrb[0].mxu0
        %v777 = vadd.f32 0.0, %v776
        %v778 = vpop.f32.mrb[0].mxu0
        %v779 = vadd.f32 0.0, %v778
        %780 = vmatprep.mubr.f32.mxu0 0.0
        %781 = vmatmul.mubr.f32.gmra.mrb[0].mxu0 %v537
        %v782 = vpop.f32.mrb[0].mxu0
        %v783 = vadd.f32 0.0, %v782
        %v784 = vpop.f32.mrb[0].mxu0
        %v785 = vadd.f32 0.0, %v784
        %786 = vmatprep.mubr.f32.mxu0 0.0
        %787 = vmatmul.mubr.f32.gmra.mrb[0].mxu0 %v540
        %v788 = vpop.f32.mrb[0].mxu0
        %v789 = vadd.f32 0.0, %v788
        %v790 = vpop.f32.mrb[0].mxu0
        %v791 = vadd.f32 0.0, %v790
        %792 = vmatprep.mubr.f32.mxu0 0.0
        %793 = vmatmul.mubr.f32.gmra.mrb[0].mxu0 %v543
        %v794 = vpop.f32.mrb[0].mxu0
        %v795 = vadd.f32 0.0, %v794
        %v796 = vpop.f32.mrb[0].mxu0
        %v797 = vadd.f32 0.0, %v796
        %798 = vmatprep.mubr.f32.mxu0 0.0
        %799 = vmatmul.mubr.f32.gmra.mrb[0].mxu0 %v546
        %v800 = vpop.f32.mrb[0].mxu0
        %v801 = vadd.f32 0.0, %v800
        %v802 = vpop.f32.mrb[0].mxu0
        %v803 = vadd.f32 0.0, %v802
        %804 = vdwg.mxu0
        %v805 = vmax.f32 %v615, %v627
        %v806 = vmax.f32 %v621, %v633
        %v807 = vmax.f32 %v805, %v639
        %v808 = vmax.f32 %v806, %v645
        %v809 = vmax.f32 %v807, %v651
        %v810 = vmax.f32 %v808, %v657
        %v811 = vmax.f32 %v809, %v663
        %v812 = vmax.f32 %v810, %v669
        %v813 = vmax.f32 %v811, %v675
        %v814 = vmax.f32 %v812, %v681
        %v815 = vmax.f32 %v813, %v687
        %v816 = vmax.f32 %v814, %v693
        %v817 = vmax.f32 %v815, %v699
        %v818 = vmax.f32 %v816, %v705
        %v819 = vmax.f32 %v817, %v711
        %v820 = vmax.f32 %v818, %v717
        %v821 = vmax.f32 %v819, %v723
        %v822 = vmax.f32 %v820, %v729
        %v823 = vmax.f32 %v821, %v735
        %v824 = vmax.f32 %v822, %v741
        %v825 = vmax.f32 %v823, %v747
        %v826 = vmax.f32 %v824, %v753
        %v827 = vmax.f32 %v825, %v759
        %v828 = vmax.f32 %v826, %v765
        %v829 = vmax.f32 %v827, %v771
        %v830 = vmax.f32 %v828, %v777
        %v831 = vmax.f32 %v829, %v783
        %v832 = vmax.f32 %v830, %v789
        %v833 = vmax.f32 %v831, %v795
        %v834 = vmax.f32 %v832, %v801
        %v835 = vmax.f32 %v833, %v834
        %v836 = vrot.slane %v835, 4
        %v837 = vmax.f32 %v835, %v836
        %v838 = vrot.slane %v837, 2
        %v839 = vmax.f32 %v837, %v838
        %v840 = vrot.slane %v839, 1
        %v841 = vmax.f32 %v839, %v840
        %v842 = vmax.f32 %v617, %v629
        %v843 = vmax.f32 %v623, %v635
        %v844 = vmax.f32 %v842, %v641
        %v845 = vmax.f32 %v843, %v647
        %v846 = vmax.f32 %v844, %v653
        %v847 = vmax.f32 %v845, %v659
        %v848 = vmax.f32 %v846, %v665
        %v849 = vmax.f32 %v847, %v671
        %v850 = vmax.f32 %v848, %v677
        %v851 = vmax.f32 %v849, %v683
        %v852 = vmax.f32 %v850, %v689
        %v853 = vmax.f32 %v851, %v695
        %v854 = vmax.f32 %v852, %v701
        %v855 = vmax.f32 %v853, %v707
        %v856 = vmax.f32 %v854, %v713
        %v857 = vmax.f32 %v855, %v719
        %v858 = vmax.f32 %v856, %v725
        %v859 = vmax.f32 %v857, %v731
        %v860 = vmax.f32 %v858, %v737
        %v861 = vmax.f32 %v859, %v743
        %v862 = vmax.f32 %v860, %v749
        %v863 = vmax.f32 %v861, %v755
        %v864 = vmax.f32 %v862, %v761
        %v865 = vmax.f32 %v863, %v767
        %v866 = vmax.f32 %v864, %v773
        %v867 = vmax.f32 %v865, %v779
        %v868 = vmax.f32 %v866, %v785
        %v869 = vmax.f32 %v867, %v791
        %v870 = vmax.f32 %v868, %v797
        %v871 = vmax.f32 %v869, %v803
        %v872 = vmax.f32 %v870, %v871
        %v873 = vrot.slane %v872, 4
        %v874 = vmax.f32 %v872, %v873
        %v875 = vrot.slane %v874, 2
        %v876 = vmax.f32 %v874, %v875
        %v877 = vrot.slane %v876, 1
        %v878 = vmax.f32 %v876, %v877
        %v879 = vsub.f32 %v615, %v841
        %v880 = vsub.f32 %v617, %v878
        %v881 = vsub.f32 %v621, %v841
        %v882 = vsub.f32 %v623, %v878
        %v883 = vsub.f32 %v627, %v841
        %v884 = vsub.f32 %v629, %v878
        %v885 = vsub.f32 %v633, %v841
        %v886 = vsub.f32 %v635, %v878
        %v887 = vsub.f32 %v639, %v841
        %v888 = vsub.f32 %v641, %v878
        %v889 = vsub.f32 %v645, %v841
        %v890 = vsub.f32 %v647, %v878
        %v891 = vsub.f32 %v651, %v841
        %v892 = vsub.f32 %v653, %v878
        %v893 = vsub.f32 %v657, %v841
        %v894 = vsub.f32 %v659, %v878
        %v895 = vsub.f32 %v663, %v841
        %v896 = vsub.f32 %v665, %v878
        %v897 = vsub.f32 %v669, %v841
        %v898 = vsub.f32 %v671, %v878
        %v899 = vsub.f32 %v675, %v841
        %v900 = vsub.f32 %v677, %v878
        %v901 = vsub.f32 %v681, %v841
        %v902 = vsub.f32 %v683, %v878
        %v903 = vsub.f32 %v687, %v841
        %v904 = vsub.f32 %v689, %v878
        %v905 = vsub.f32 %v693, %v841
        %v906 = vsub.f32 %v695, %v878
        %v907 = vsub.f32 %v699, %v841
        %v908 = vsub.f32 %v701, %v878
        %v909 = vsub.f32 %v705, %v841
        %v910 = vsub.f32 %v707, %v878
        %v911 = vsub.f32 %v711, %v841
        %v912 = vsub.f32 %v713, %v878
        %v913 = vsub.f32 %v717, %v841
        %v914 = vsub.f32 %v719, %v878
        %v915 = vsub.f32 %v723, %v841
        %v916 = vsub.f32 %v725, %v878
        %v917 = vsub.f32 %v729, %v841
        %v918 = vsub.f32 %v731, %v878
        %v919 = vsub.f32 %v735, %v841
        %v920 = vsub.f32 %v737, %v878
        %v921 = vsub.f32 %v741, %v841
        %v922 = vsub.f32 %v743, %v878
        %v923 = vsub.f32 %v747, %v841
        %v924 = vsub.f32 %v749, %v878
        %v925 = vsub.f32 %v753, %v841
        %v926 = vsub.f32 %v755, %v878
        %v927 = vsub.f32 %v759, %v841
        %v928 = vsub.f32 %v761, %v878
        %v929 = vsub.f32 %v765, %v841
        %v930 = vsub.f32 %v767, %v878
        %v931 = vsub.f32 %v771, %v841
        %v932 = vsub.f32 %v773, %v878
        %v933 = vsub.f32 %v777, %v841
        %v934 = vsub.f32 %v779, %v878
        %v935 = vsub.f32 %v783, %v841
        %v936 = vsub.f32 %v785, %v878
        %v937 = vsub.f32 %v789, %v841
        %v938 = vsub.f32 %v791, %v878
        %v939 = vsub.f32 %v795, %v841
        %v940 = vsub.f32 %v797, %v878
        %v941 = vsub.f32 %v801, %v841
        %v942 = vsub.f32 %v803, %v878
        %v943 = vmul.f32 %v879, 1.442695
        %v944 = vpow.pop %v943
        %v945 = vmul.f32 %v880, 1.442695
        %v946 = vpow.pop %v945
        %v947 = vmul.f32 %v881, 1.442695
        %v948 = vpow.pop %v947
        %v949 = vmul.f32 %v882, 1.442695
        %v950 = vpow.pop %v949
        %v951 = vmul.f32 %v883, 1.442695
        %v952 = vpow.pop %v951
        %v953 = vmul.f32 %v884, 1.442695
        %v954 = vpow.pop %v953
        %v955 = vmul.f32 %v885, 1.442695
        %v956 = vpow.pop %v955
        %v957 = vmul.f32 %v886, 1.442695
        %v958 = vpow.pop %v957
        %v959 = vmul.f32 %v887, 1.442695
        %v960 = vpow.pop %v959
        %v961 = vmul.f32 %v888, 1.442695
        %v962 = vpow.pop %v961
        %v963 = vmul.f32 %v889, 1.442695
        %v964 = vpow.pop %v963
        %v965 = vmul.f32 %v890, 1.442695
        %v966 = vpow.pop %v965
        %v967 = vmul.f32 %v891, 1.442695
        %v968 = vpow.pop %v967
        %v969 = vmul.f32 %v892, 1.442695
        %v970 = vpow.pop %v969
        %v971 = vmul.f32 %v893, 1.442695
        %v972 = vpow.pop %v971
        %v973 = vmul.f32 %v894, 1.442695
        %v974 = vpow.pop %v973
        %v975 = vmul.f32 %v895, 1.442695
        %v976 = vpow.pop %v975
        %v977 = vmul.f32 %v896, 1.442695
        %v978 = vpow.pop %v977
        %v979 = vmul.f32 %v897, 1.442695
        %v980 = vpow.pop %v979
        %v981 = vmul.f32 %v898, 1.442695
        %v982 = vpow.pop %v981
        %v983 = vmul.f32 %v899, 1.442695
        %v984 = vpow.pop %v983
        %v985 = vmul.f32 %v900, 1.442695
        %v986 = vpow.pop %v985
        %v987 = vmul.f32 %v901, 1.442695
        %v988 = vpow.pop %v987
        %v989 = vmul.f32 %v902, 1.442695
        %v990 = vpow.pop %v989
        %v991 = vmul.f32 %v903, 1.442695
        %v992 = vpow.pop %v991
        %v993 = vmul.f32 %v904, 1.442695
        %v994 = vpow.pop %v993
        %v995 = vmul.f32 %v905, 1.442695
        %v996 = vpow.pop %v995
        %v997 = vmul.f32 %v906, 1.442695
        %v998 = vpow.pop %v997
        %v999 = vmul.f32 %v907, 1.442695
        %v1000 = vpow.pop %v999
        %v1001 = vmul.f32 %v908, 1.442695
        %v1002 = vpow.pop %v1001
        %v1003 = vmul.f32 %v909, 1.442695
        %v1004 = vpow.pop %v1003
        %v1005 = vmul.f32 %v910, 1.442695
        %v1006 = vpow.pop %v1005
        %v1007 = vmul.f32 %v911, 1.442695
        %v1008 = vpow.pop %v1007
        %v1009 = vmul.f32 %v912, 1.442695
        %v1010 = vpow.pop %v1009
        %v1011 = vmul.f32 %v913, 1.442695
        %v1012 = vpow.pop %v1011
        %v1013 = vmul.f32 %v914, 1.442695
        %v1014 = vpow.pop %v1013
        %v1015 = vmul.f32 %v915, 1.442695
        %v1016 = vpow.pop %v1015
        %v1017 = vmul.f32 %v916, 1.442695
        %v1018 = vpow.pop %v1017
        %v1019 = vmul.f32 %v917, 1.442695
        %v1020 = vpow.pop %v1019
        %v1021 = vmul.f32 %v918, 1.442695
        %v1022 = vpow.pop %v1021
        %v1023 = vmul.f32 %v919, 1.442695
        %v1024 = vpow.pop %v1023
        %v1025 = vmul.f32 %v920, 1.442695
        %v1026 = vpow.pop %v1025
        %v1027 = vmul.f32 %v921, 1.442695
        %v1028 = vpow.pop %v1027
        %v1029 = vmul.f32 %v922, 1.442695
        %v1030 = vpow.pop %v1029
        %v1031 = vmul.f32 %v923, 1.442695
        %v1032 = vpow.pop %v1031
        %v1033 = vmul.f32 %v924, 1.442695
        %v1034 = vpow.pop %v1033
        %v1035 = vmul.f32 %v925, 1.442695
        %v1036 = vpow.pop %v1035
        %v1037 = vmul.f32 %v926, 1.442695
        %v1038 = vpow.pop %v1037
        %v1039 = vmul.f32 %v927, 1.442695
        %v1040 = vpow.pop %v1039
        %v1041 = vmul.f32 %v928, 1.442695
        %v1042 = vpow.pop %v1041
        %v1043 = vmul.f32 %v929, 1.442695
        %v1044 = vpow.pop %v1043
        %v1045 = vmul.f32 %v930, 1.442695
        %v1046 = vpow.pop %v1045
        %v1047 = vmul.f32 %v931, 1.442695
        %v1048 = vpow.pop %v1047
        %v1049 = vmul.f32 %v932, 1.442695
        %v1050 = vpow.pop %v1049
        %v1051 = vmul.f32 %v933, 1.442695
        %v1052 = vpow.pop %v1051
        %v1053 = vmul.f32 %v934, 1.442695
        %v1054 = vpow.pop %v1053
        %v1055 = vmul.f32 %v935, 1.442695
        %v1056 = vpow.pop %v1055
        %v1057 = vmul.f32 %v936, 1.442695
        %v1058 = vpow.pop %v1057
        %v1059 = vmul.f32 %v937, 1.442695
        %v1060 = vpow.pop %v1059
        %v1061 = vmul.f32 %v938, 1.442695
        %v1062 = vpow.pop %v1061
        %v1063 = vmul.f32 %v939, 1.442695
        %v1064 = vpow.pop %v1063
        %v1065 = vmul.f32 %v940, 1.442695
        %v1066 = vpow.pop %v1065
        %v1067 = vmul.f32 %v941, 1.442695
        %v1068 = vpow.pop %v1067
        %v1069 = vmul.f32 %v942, 1.442695
        %v1070 = vpow.pop %v1069
        %v1071 = vadd.f32 %v944, %v948
        %v1072 = vadd.f32 %v1071, %v952
        %v1073 = vadd.f32 %v1072, %v956
        %v1074 = vadd.f32 %v1073, %v960
        %v1075 = vadd.f32 %v1074, %v964
        %v1076 = vadd.f32 %v1075, %v968
        %v1077 = vadd.f32 %v1076, %v972
        %v1078 = vadd.f32 %v1077, %v976
        %v1079 = vadd.f32 %v1078, %v980
        %v1080 = vadd.f32 %v1079, %v984
        %v1081 = vadd.f32 %v1080, %v988
        %v1082 = vadd.f32 %v1081, %v992
        %v1083 = vadd.f32 %v1082, %v996
        %v1084 = vadd.f32 %v1083, %v1000
        %v1085 = vadd.f32 %v1084, %v1004
        %v1086 = vadd.f32 %v1085, %v1008
        %v1087 = vadd.f32 %v1086, %v1012
        %v1088 = vadd.f32 %v1087, %v1016
        %v1089 = vadd.f32 %v1088, %v1020
        %v1090 = vadd.f32 %v1089, %v1024
        %v1091 = vadd.f32 %v1090, %v1028
        %v1092 = vadd.f32 %v1091, %v1032
        %v1093 = vadd.f32 %v1092, %v1036
        %v1094 = vadd.f32 %v1093, %v1040
        %v1095 = vadd.f32 %v1094, %v1044
        %v1096 = vadd.f32 %v1095, %v1048
        %v1097 = vadd.f32 %v1096, %v1052
        %v1098 = vadd.f32 %v1097, %v1056
        %v1099 = vadd.f32 %v1098, %v1060
        %v1100 = vadd.f32 %v1099, %v1064
        %v1101 = vadd.f32 %v1100, %v1068
        %v1102 = vrot.slane %v1101, 4
        %v1103 = vadd.f32 %v1101, %v1102
        %v1104 = vrot.slane %v1103, 2
        %v1105 = vadd.f32 %v1103, %v1104
        %v1106 = vrot.slane %v1105, 1
        %v1107 = vadd.f32 %v1105, %v1106
        %v1108 = vadd.f32 %v946, %v950
        %v1109 = vadd.f32 %v1108, %v954
        %v1110 = vadd.f32 %v1109, %v958
        %v1111 = vadd.f32 %v1110, %v962
        %v1112 = vadd.f32 %v1111, %v966
        %v1113 = vadd.f32 %v1112, %v970
        %v1114 = vadd.f32 %v1113, %v974
        %v1115 = vadd.f32 %v1114, %v978
        %v1116 = vadd.f32 %v1115, %v982
        %v1117 = vadd.f32 %v1116, %v986
        %v1118 = vadd.f32 %v1117, %v990
        %v1119 = vadd.f32 %v1118, %v994
        %v1120 = vadd.f32 %v1119, %v998
        %v1121 = vadd.f32 %v1120, %v1002
        %v1122 = vadd.f32 %v1121, %v1006
        %v1123 = vadd.f32 %v1122, %v1010
        %v1124 = vadd.f32 %v1123, %v1014
        %v1125 = vadd.f32 %v1124, %v1018
        %v1126 = vadd.f32 %v1125, %v1022
        %v1127 = vadd.f32 %v1126, %v1026
        %v1128 = vadd.f32 %v1127, %v1030
        %v1129 = vadd.f32 %v1128, %v1034
        %v1130 = vadd.f32 %v1129, %v1038
        %v1131 = vadd.f32 %v1130, %v1042
        %v1132 = vadd.f32 %v1131, %v1046
        %v1133 = vadd.f32 %v1132, %v1050
        %v1134 = vadd.f32 %v1133, %v1054
        %v1135 = vadd.f32 %v1134, %v1058
        %v1136 = vadd.f32 %v1135, %v1062
        %v1137 = vadd.f32 %v1136, %v1066
        %v1138 = vadd.f32 %v1137, %v1070
        %v1139 = vrot.slane %v1138, 4
        %v1140 = vadd.f32 %v1138, %v1139
        %v1141 = vrot.slane %v1140, 2
        %v1142 = vadd.f32 %v1140, %v1141
        %v1143 = vrot.slane %v1142, 1
        %v1144 = vadd.f32 %v1142, %v1143
        %1145 = vmatprep.subr.mxu0 %v946
        %1146 = vmatpush1.msra.mxu0 %v944
        %1147 = vmatprep.subr.mxu0 %v950
        %1148 = vmatpush1.msra.mxu0 %v948
        %1149 = vmatprep.subr.mxu0 %v954
        %1150 = vmatpush1.msra.mxu0 %v952
        %1151 = vmatprep.subr.mxu0 %v958
        %1152 = vmatpush1.msra.mxu0 %v956
        %1153 = vmatprep.subr.mxu0 %v962
        %1154 = vmatpush1.msra.mxu0 %v960
        %1155 = vmatprep.subr.mxu0 %v966
        %1156 = vmatpush1.msra.mxu0 %v964
        %1157 = vmatprep.subr.mxu0 %v970
        %1158 = vmatpush1.msra.mxu0 %v968
        %1159 = vmatprep.subr.mxu0 %v974
        %1160 = vmatpush1.msra.mxu0 %v972
        %1161 = vmatprep.subr.mxu0 %v978
        %1162 = vmatpush1.msra.mxu0 %v976
        %1163 = vmatprep.subr.mxu0 %v982
        %1164 = vmatpush1.msra.mxu0 %v980
        %1165 = vmatprep.subr.mxu0 %v986
        %1166 = vmatpush1.msra.mxu0 %v984
        %1167 = vmatprep.subr.mxu0 %v990
        %1168 = vmatpush1.msra.mxu0 %v988
        %1169 = vmatprep.subr.mxu0 %v994
        %1170 = vmatpush1.msra.mxu0 %v992
        %1171 = vmatprep.subr.mxu0 %v998
        %1172 = vmatpush1.msra.mxu0 %v996
        %1173 = vmatprep.subr.mxu0 %v1002
        %1174 = vmatpush1.msra.mxu0 %v1000
        %1175 = vmatprep.subr.mxu0 %v1006
        %1176 = vmatpush1.msra.mxu0 %v1004
        %1177 = vmatprep.subr.mxu0 %v1010
        %1178 = vmatpush1.msra.mxu0 %v1008
        %1179 = vmatprep.subr.mxu0 %v1014
        %1180 = vmatpush1.msra.mxu0 %v1012
        %1181 = vmatprep.subr.mxu0 %v1018
        %1182 = vmatpush1.msra.mxu0 %v1016
        %1183 = vmatprep.subr.mxu0 %v1022
        %1184 = vmatpush1.msra.mxu0 %v1020
        %1185 = vmatprep.subr.mxu0 %v1026
        %1186 = vmatpush1.msra.mxu0 %v1024
        %1187 = vmatprep.subr.mxu0 %v1030
        %1188 = vmatpush1.msra.mxu0 %v1028
        %1189 = vmatprep.subr.mxu0 %v1034
        %1190 = vmatpush1.msra.mxu0 %v1032
        %1191 = vmatprep.subr.mxu0 %v1038
        %1192 = vmatpush1.msra.mxu0 %v1036
        %1193 = vmatprep.subr.mxu0 %v1042
        %1194 = vmatpush1.msra.mxu0 %v1040
        %1195 = vmatprep.subr.mxu0 %v1046
        %1196 = vmatpush1.msra.mxu0 %v1044
        %1197 = vmatprep.subr.mxu0 %v1050
        %1198 = vmatpush1.msra.mxu0 %v1048
        %1199 = vmatprep.subr.mxu0 %v1054
        %1200 = vmatpush1.msra.mxu0 %v1052
        %1201 = vmatprep.subr.mxu0 %v1058
        %1202 = vmatpush1.msra.mxu0 %v1056
        %1203 = vmatprep.subr.mxu0 %v1062
        %1204 = vmatpush1.msra.mxu0 %v1060
        %1205 = vmatprep.subr.mxu0 %v1066
        %1206 = vmatpush1.msra.mxu0 %v1064
        %1207 = vmatprep.subr.mxu0 %v1070
        %1208 = vmatpush1.msra.mxu0 %v1068
        %1209 = vmatprep.mubr.f32.mxu0 %v263
        %1210 = vmatmul.mubr.f32.gmra.mrb[0].mxu0 %v262
        %v1211 = vpop.f32.mrb[0].mxu0
        %v1212 = vadd.f32 0.0, %v1211
        %v1213 = vpop.f32.mrb[0].mxu0
        %v1214 = vadd.f32 0.0, %v1213
        %1215 = vmatprep.mubr.f32.mxu0 %v265
        %1216 = vmatmul.mubr.f32.gmra.mrb[0].mxu0 %v264
        %v1217 = vpop.f32.mrb[0].mxu0
        %v1218 = vadd.f32 0.0, %v1217
        %v1219 = vpop.f32.mrb[0].mxu0
        %v1220 = vadd.f32 0.0, %v1219
        %1221 = vmatprep.mubr.f32.mxu0 %v267
        %1222 = vmatmul.mubr.f32.gmra.mrb[0].mxu0 %v266
        %v1223 = vpop.f32.mrb[0].mxu0
        %v1224 = vadd.f32 0.0, %v1223
        %v1225 = vpop.f32.mrb[0].mxu0
        %v1226 = vadd.f32 0.0, %v1225
        %1227 = vmatprep.mubr.f32.mxu0 %v269
        %1228 = vmatmul.mubr.f32.gmra.mrb[0].mxu0 %v268
        %v1229 = vpop.f32.mrb[0].mxu0
        %v1230 = vadd.f32 0.0, %v1229
        %v1231 = vpop.f32.mrb[0].mxu0
        %v1232 = vadd.f32 0.0, %v1231
        %1233 = vdwg.mxu0
        %v1234 = vrcp.pop %v1107
        %v1235 = vrcp.pop %v1144
        %v1236 = vmul.f32 %v1212, %v1234
        %v1237 = vmul.f32 %v1214, %v1235
        %v1238 = vmul.f32 %v1218, %v1234
        %v1239 = vmul.f32 %v1220, %v1235
        %v1240 = vmul.f32 %v1224, %v1234
        %v1241 = vmul.f32 %v1226, %v1235
        %v1242 = vmul.f32 %v1230, %v1234
        %v1243 = vmul.f32 %v1232, %v1235
        %v1244 = vld [vmem:[#allocation8] sm:$0xff]
        %v1245 = vld [vmem:[#allocation8 + $0x8] sm:$0xff]
        %v1246 = vld [vmem:[#allocation8 + $0x10] sm:$0xff]
        %v1247 = vld [vmem:[#allocation8 + $0x18] sm:$0xff]
        %v1249 = vsel %vm286, %v1244, 0
        %v1252 = vsel %vm286, %v1245, 0
        %v1255 = vsel %vm286, %v1246, 0
        %v1258 = vsel %vm286, %v1247, 0
        %1260 = vmatprep.subr.mxu0 %v1237
        %1261 = vmatpush1.msra.mxu0 %v1236
        %1262 = vmatprep.subr.mxu0 %v1239
        %1263 = vmatpush1.msra.mxu0 %v1238
        %1264 = vmatprep.subr.mxu0 %v1241
        %1265 = vmatpush1.msra.mxu0 %v1240
        %1266 = vmatprep.subr.mxu0 %v1243
        %1267 = vmatpush1.msra.mxu0 %v1242
        %1268 = vmatprep.subr.mxu0 0.0
        %1269 = vmatpush1.msra.mxu0 0.0
        %1270 = vmatprep.subr.mxu0 0.0
        %1271 = vmatpush1.msra.mxu0 0.0
        %1272 = vmatprep.subr.mxu0 0.0
        %1273 = vmatpush1.msra.mxu0 0.0
        %1274 = vmatprep.subr.mxu0 0.0
        %1275 = vmatpush1.msra.mxu0 0.0
        %1276 = vmatprep.subr.mxu0 0.0
        %1277 = vmatpush1.msra.mxu0 0.0
        %1278 = vmatprep.subr.mxu0 0.0
        %1279 = vmatpush1.msra.mxu0 0.0
        %1280 = vmatprep.subr.mxu0 0.0
        %1281 = vmatpush1.msra.mxu0 0.0
        %1282 = vmatprep.subr.mxu0 0.0
        %1283 = vmatpush1.msra.mxu0 0.0
        %1284 = vmatprep.subr.mxu0 0.0
        %1285 = vmatpush1.msra.mxu0 0.0
        %1286 = vmatprep.subr.mxu0 0.0
        %1287 = vmatpush1.msra.mxu0 0.0
        %1288 = vmatprep.subr.mxu0 0.0
        %1289 = vmatpush1.msra.mxu0 0.0
        %1290 = vmatprep.subr.mxu0 0.0
        %1291 = vmatpush1.msra.mxu0 0.0
        %1292 = vmatprep.subr.mxu0 0.0
        %1293 = vmatpush1.msra.mxu0 0.0
        %1294 = vmatprep.subr.mxu0 0.0
        %1295 = vmatpush1.msra.mxu0 0.0
        %1296 = vmatprep.subr.mxu0 0.0
        %1297 = vmatpush1.msra.mxu0 0.0
        %1298 = vmatprep.subr.mxu0 0.0
        %1299 = vmatpush1.msra.mxu0 0.0
        %1300 = vmatprep.subr.mxu0 0.0
        %1301 = vmatpush1.msra.mxu0 0.0
        %1302 = vmatprep.subr.mxu0 0.0
        %1303 = vmatpush1.msra.mxu0 0.0
        %1304 = vmatprep.subr.mxu0 0.0
        %1305 = vmatpush1.msra.mxu0 0.0
        %1306 = vmatprep.subr.mxu0 0.0
        %1307 = vmatpush1.msra.mxu0 0.0
        %1308 = vmatprep.subr.mxu0 0.0
        %1309 = vmatpush1.msra.mxu0 0.0
        %1310 = vmatprep.subr.mxu0 0.0
        %1311 = vmatpush1.msra.mxu0 0.0
        %1312 = vmatprep.subr.mxu0 0.0
        %1313 = vmatpush1.msra.mxu0 0.0
        %1314 = vmatprep.subr.mxu0 0.0
        %1315 = vmatpush1.msra.mxu0 0.0
        %1316 = vmatprep.subr.mxu0 0.0
        %1317 = vmatpush1.msra.mxu0 0.0
        %1318 = vmatprep.subr.mxu0 0.0
        %1319 = vmatpush1.msra.mxu0 0.0
        %1320 = vmatprep.subr.mxu0 0.0
        %1321 = vmatpush1.msra.mxu0 0.0
        %1322 = vmatprep.subr.mxu0 0.0
        %1323 = vmatpush1.msra.mxu0 0.0
        %1324 = vmatprep.mubr.f32.mxu0 0.0
        %1325 = vmatmul.mubr.f32.gmra.mrb[0].mxu0 %v1249
        %v1326 = vpop.f32.mrb[0].mxu0
        %v1327 = vadd.f32 0.0, %v1326
        %v1328 = vpop.f32.mrb[0].mxu0
        %v1329 = vadd.f32 0.0, %v1328
        %1330 = vmatprep.mubr.f32.mxu0 0.0
        %1331 = vmatmul.mubr.f32.gmra.mrb[0].mxu0 %v1252
        %v1332 = vpop.f32.mrb[0].mxu0
        %v1333 = vadd.f32 0.0, %v1332
        %v1334 = vpop.f32.mrb[0].mxu0
        %v1335 = vadd.f32 0.0, %v1334
        %1336 = vmatprep.mubr.f32.mxu0 0.0
        %1337 = vmatmul.mubr.f32.gmra.mrb[0].mxu0 %v1255
        %v1338 = vpop.f32.mrb[0].mxu0
        %v1339 = vadd.f32 0.0, %v1338
        %v1340 = vpop.f32.mrb[0].mxu0
        %v1341 = vadd.f32 0.0, %v1340
        %1342 = vmatprep.mubr.f32.mxu0 0.0
        %1343 = vmatmul.mubr.f32.gmra.mrb[0].mxu0 %v1258
        %v1344 = vpop.f32.mrb[0].mxu0
        %v1345 = vadd.f32 0.0, %v1344
        %v1346 = vpop.f32.mrb[0].mxu0
        %v1347 = vadd.f32 0.0, %v1346
        %1348 = vdwg.mxu0
        %s1349 = sld [smem:[#allocation2]]
        %v1350 = vstv %s1349
        %v1351 = vmul.f32 %v1350, %v1327
        %v1352 = vmul.f32 %v1350, %v1329
        %v1353 = vmul.f32 %v1350, %v1333
        %v1354 = vmul.f32 %v1350, %v1335
        %v1355 = vmul.f32 %v1350, %v1339
        %v1356 = vmul.f32 %v1350, %v1341
        %v1357 = vmul.f32 %v1350, %v1345
        %v1358 = vmul.f32 %v1350, %v1347
        %v1359 = vadd.f32 %v1351, %v274
        %v1360 = vadd.f32 %v1352, %v275
        %v1361 = vadd.f32 %v1353, %v276
        %v1362 = vadd.f32 %v1354, %v277
        %v1363 = vadd.f32 %v1355, %v278
        %v1364 = vadd.f32 %v1356, %v279
        %v1365 = vadd.f32 %v1357, %v280
        %v1366 = vadd.f32 %v1358, %v281
        %1367 = vst [vmem:[%s259] sm:$0xff] %v1359
        %1368 = vst [vmem:[%s259 + $0x8] sm:$0xff] %v1360
        %1369 = vst [vmem:[%s259 + $0x10] sm:$0xff] %v1361
        %1370 = vst [vmem:[%s259 + $0x18] sm:$0xff] %v1362
        %1371 = vst [vmem:[%s259 + $0x20] sm:$0xff] %v1363
        %1372 = vst [vmem:[%s259 + $0x28] sm:$0xff] %v1364
        %1373 = vst [vmem:[%s259 + $0x30] sm:$0xff] %v1365
        %1374 = vst [vmem:[%s259 + $0x38] sm:$0xff] %v1366
        %s1375 = sand.u32 %s134, 1
        %s1376 = scalar_lea.sflag [#allocation5], %s1375
        %s1377 = sand.u32 %s134, 1
        %s1378 = smul.addr %s1377, 64
        %s1379 = scalar_lea.vmem [#allocation9], %s1378
        // Predicated region
        $region49: #{tpu_custom_call.1} parent=35 // pred_check
          %p1380 = pneg %p144
        $region50: #{tpu_custom_call.1} parent=35 // pred_check_branch
          %1382 = sbr.rel (%p1380) target = $region52
        $region51: #{tpu_custom_call.1} parent=35 // pred_region
          %s1383 = smul.u32 2, %s28
          %s1385 = ssub.s32 1024, 1024
          %1386 = vsyncadd %s1376, %s1385
          %s1387 = smul.addr %s27, 8
          %s1388 = sadd.s32 %s1383, %s1387
          %s1389 = smul.addr %s1388, 128
          %s1390 = scalar_lea.hbm %s4, %s1389
          %s1391 = sshll.u32 %s1379, 4
          %s1392 = int_to_ptr.vmem [resolvable:$true] %s1391
          %1397 = dma.vmem_to_hbm [thread:$0]  %s1392, 1024, %s1390, %s1376, 256, 256, 16
        $region52: #{tpu_custom_call.1} parent=35 // pred_fallthru
          _
      $region36: #{tpu_custom_call.1} parent=5 // pred_fallthru
        _
      %p1398 = scmp.le.s32.totalorder 2, %s18
      // Predicated region
      $region53: #{tpu_custom_call.1} parent=5 // pred_check
        %p1399 = pneg %p1398
      $region54: #{tpu_custom_call.1} parent=5 // pred_check_branch
        %1401 = sbr.rel (%p1399) target = $region56
      $region55: #{tpu_custom_call.1} parent=5 // pred_region
        %s1402 = ssub.s32 %s18, 2
        // Predicated region
        $region57: #{tpu_custom_call.1} parent=55 // pred_check
          %p1403 = pneg %p150
        $region58: #{tpu_custom_call.1} parent=55 // pred_check_branch
          %1405 = sbr.rel (%p1403) target = $region60
        $region59: #{tpu_custom_call.1} parent=55 // pred_region
          %s1406 = sand.u32 %s135, 1
          %s1407 = scalar_lea.sflag [#allocation5], %s1406
          %s1408 = sand.u32 %s135, 1
          %s1409 = smul.addr %s1408, 64
          %s1410 = scalar_lea.vmem [#allocation9], %s1409
          %1411 = dma.done %s1407, 1024
        $region60: #{tpu_custom_call.1} parent=55 // pred_fallthru
          _
      $region56: #{tpu_custom_call.1} parent=5 // pred_fallthru
        _
    $region6: #{tpu_custom_call.1} parent=1 // loop_footer
      %s22 = sadd.s32 1, %s18
    $region7: #{tpu_custom_call.1} parent=1 // loop_footer_branch
      %17 = sbr.rel target = $region3
    $region8: #{tpu_custom_call.1} parent=1 // loop_exit
      _
    %1412 = vsyncpa [#allocation4], 1
    %s1413 = scalar_lea.sflag [#allocation4], 1
    %1414 = vsyncpa %s1413, 1
    %1415 = vsyncpa [#allocation7], 1
    %1416 = vsyncpa [#allocation5], 1
    %s1417 = scalar_lea.sflag [#allocation5], 1
    %1418 = vsyncpa %s1417, 1

</llo_original>
